<compile_context>
chip_gen: v7x
topology: tpu7x:2x2x1
jax: 0.10.0
libtpu: 0.0.40
codegen_flags: <defaults>
</compile_context>

<pallas_src>
import functools
import math

import jax
import jax.numpy as jnp
from jax import lax
from jax.experimental import pallas as pl
from jax.experimental.pallas import tpu as pltpu

LANE = 128


def _round_up(a, b):
    return -(-a // b) * b


def _chip_config():
    """Returns (ncores, target_block_rows, vmem_limit_bytes) for this chip."""
    kind = ""
    try:
        kind = jax.devices()[0].device_kind.lower()
    except Exception:
        pass
    vmem_cap = None
    try:
        vmem_cap = int(pltpu.get_tpu_info().vmem_capacity_bytes)
    except Exception:
        pass
    is_v7 = ("v7" in kind) or (vmem_cap is not None and vmem_cap <= (64 << 20))
    if vmem_cap is None:
        vmem_cap = (64 << 20) if is_v7 else (128 << 20)
    if is_v7:
        # v7x: 64 MiB VMEM, 2 TensorCores -> 2 MiB tiles, shard leading axis.
        ncores, target_rows = 2, 4096
    else:
        # v5e / v6e: 128 MiB VMEM, 1 TensorCore -> 4 MiB tiles.
        ncores, target_rows = 1, 8192
    vmem_limit = min(vmem_cap - (16 << 20), 100 << 20)
    return ncores, target_rows, int(vmem_limit)


def _dice_bce_kernel(x_ref, t_ref, o_ref, *, block_rows, steps_per_core,
                     valid_rows):
    c = pl.program_id(0)
    i = pl.program_id(1)

    @pl.when(i == 0)
    def _init():
        o_ref[...] = jnp.zeros_like(o_ref)

    # Rows of this block holding real data; <= 0 for clamped duplicate blocks,
    # < block_rows only for the final (partial) block.
    n_valid = valid_rows - (c * steps_per_core + i) * block_rows

    def accumulate(x, t):
        # Shared-exp sigmoid / softplus:
        #   sp_pos = softplus(x)  = -log(1 - p)
        #   sp_neg = softplus(-x) = -log(p)     (= sp_pos - x)
        e = jnp.exp(-jnp.abs(x))
        sp_pos = jnp.maximum(x, 0.0) + jnp.log1p(e)
        sp_neg = sp_pos - x
        # torch.nn.functional.binary_cross_entropy clamps each log term at -100.
        a = jnp.minimum(sp_pos, 100.0)
        b = jnp.minimum(sp_neg, 100.0)
        bce = a + t * (b - a)
        p = jnp.exp(-sp_neg)              # sigmoid(x) with no divide
        inter = jnp.sum(p * t, axis=0, keepdims=True)
        sum_p = jnp.sum(p, axis=0, keepdims=True)
        sum_t = jnp.sum(t, axis=0, keepdims=True)
        sum_b = jnp.sum(bce, axis=0, keepdims=True)
        o_ref[...] += jnp.concatenate([inter, sum_p, sum_t, sum_b], axis=0)

    # Fast path: whole block is real data -> no masking at all.
    @pl.when(n_valid >= block_rows)
    def _full():
        accumulate(x_ref[...].astype(jnp.float32),
                   t_ref[...].astype(jnp.float32))

    # Tail path (final / duplicate block only): zero the garbage rows.  A zero
    # element contributes exactly p=0.5 and bce=log(2); the wrapper removes
    # those analytically.
    @pl.when(n_valid < block_rows)
    def _tail():
        row = lax.broadcasted_iota(jnp.int32, (block_rows, LANE), 0)
        m = row < n_valid
        accumulate(jnp.where(m, x_ref[...].astype(jnp.float32), 0.0),
                   jnp.where(m, t_ref[...].astype(jnp.float32), 0.0))


def dice_bce_loss(inputs, targets, smooth=1.0):
    """Pallas implementation of DiceBCELoss.forward (scalar f32 output)."""
    x = inputs.reshape(-1)          # keep native dtype; cast happens in-kernel
    t = targets.reshape(-1)
    n = int(x.shape[0])

    # Pad only the ragged sub-lane tail (<=127 zeros) to a whole 128-lane row.
    lane_pad = (-n) % LANE
    if lane_pad:
        x = jnp.pad(x, (0, lane_pad))
        t = jnp.pad(t, (0, lane_pad))
    rows = (n + lane_pad) // LANE
    x2 = x.reshape(rows, LANE)
    t2 = t.reshape(rows, LANE)

    ncores, target_rows, vmem_limit = _chip_config()

    # Sublane granularity for the narrowest streamed dtype (8 f32 / 16 bf16 / 32 int8).
    sub = max(max(8, 32 // jnp.dtype(x2.dtype).itemsize),
              max(8, 32 // jnp.dtype(t2.dtype).itemsize))
    block_rows = _round_up(min(target_rows, _round_up(rows, sub)), sub)
    total_blocks = -(-rows // block_rows)
    steps_per_core = -(-total_blocks // ncores)

    if ncores * steps_per_core > total_blocks:
        # Some (core, step) pairs are beyond the data: re-read the last block
        # (cheap) and let the in-kernel mask zero it out completely.
        def in_map(c, i):
            return (jnp.minimum(c * steps_per_core + i, total_blocks - 1), 0)
    else:
        def in_map(c, i):
            return (c * steps_per_core + i, 0)

    kernel = functools.partial(
        _dice_bce_kernel,
        block_rows=block_rows,
        steps_per_core=steps_per_core,
        valid_rows=rows,
    )

    if ncores > 1:
        dims = (getattr(pltpu, "CORE_PARALLEL", "parallel"), "arbitrary")
    else:
        dims = ("arbitrary", "arbitrary")

    partials = pl.pallas_call(
        kernel,
        out_shape=jax.ShapeDtypeStruct((ncores, 4, LANE), jnp.float32),
        grid_spec=pltpu.PrefetchScalarGridSpec(
            num_scalar_prefetch=0,
            grid=(ncores, steps_per_core),
            in_specs=[
                pl.BlockSpec((block_rows, LANE), in_map),
                pl.BlockSpec((block_rows, LANE), in_map),
            ],
            out_specs=pl.BlockSpec((None, 4, LANE), lambda c, i: (c, 0, 0)),
        ),
        compiler_params=pltpu.CompilerParams(
            dimension_semantics=dims,
            vmem_limit_bytes=vmem_limit,
        ),
    )(x2, t2)

    # Analytic correction: every streamed element that was not real data behaved
    # exactly like a zero (x=0, t=0) -> it added 0.5 to sum_p and log(2) to the
    # BCE sum, and nothing to inter / sum_t.
    streamed = ncores * steps_per_core * block_rows * LANE
    pad_eq = streamed - n

    sums = jnp.sum(partials, axis=(0, 2))                  # (4,)
    inter, sum_p, sum_t, bce_sum = sums[0], sums[1], sums[2], sums[3]
    sum_p = sum_p - 0.5 * pad_eq
    bce_sum = bce_sum - math.log(2.0) * pad_eq

    dice_loss = 1.0 - (2.0 * inter + smooth) / (sum_p + sum_t + smooth)
    return bce_sum / n + dice_loss


def _reference(inputs, targets, smooth=1.0):
    p = jax.nn.sigmoid(inputs.reshape(-1).astype(jnp.float32))
    t = targets.reshape(-1).astype(jnp.float32)
    inter = jnp.sum(p * t)
    dice = 1.0 - (2.0 * inter + smooth) / (jnp.sum(p) + jnp.sum(t) + smooth)
    bce = jnp.mean(
        -(t * jnp.maximum(jnp.log(p), -100.0)
          + (1.0 - t) * jnp.maximum(jnp.log1p(-p), -100.0))
    )
    return bce + dice


if __name__ == "__main__":
    key = jax.random.PRNGKey(0)
    k1, k2 = jax.random.split(key)
    # Shapes consistent with a segmentation head output: NCHW = (2, 4, 16, 16)
    inputs = jax.random.normal(k1, (2, 4, 16, 16), dtype=jnp.float32)
    targets = (jax.random.uniform(k2, (2, 4, 16, 16)) > 0.5).astype(jnp.float32)

    loss = jax.block_until_ready(dice_bce_loss(inputs, targets))
    ref = jax.block_until_ready(_reference(inputs, targets))
    assert jnp.allclose(loss, ref, atol=1e-5, rtol=1e-5), (loss, ref)
    print("KERNEL_OK")
</pallas_src>

<mosaic_0001>
module attributes {stable_mosaic.version = 11 : i64} {
  func.func @_dice_bce_kernel(%arg0: i32, %arg1: i32, %arg2: memref<16x128xf32, #tpu.memory_space<vmem>>, %arg3: memref<16x128xf32, #tpu.memory_space<vmem>>, %arg4: memref<1x4x128xf32, #tpu.memory_space<vmem>>) attributes {dimension_semantics = [#tpu.dimension_semantics<arbitrary>, #tpu.dimension_semantics<arbitrary>], iteration_bounds = array<i64: 1, 1>, scalar_prefetch = 0 : i64, scratch_operands = 0 : i64, tpu.core_type = #tpu.core_type<tc>, window_params = [{transform_indices = @transform_0, window_bounds = array<i64: 16, 128>}, {transform_indices = @transform_1, window_bounds = array<i64: 16, 128>}, {transform_indices = @transform_2, window_bounds = array<i64: 1, 4, 128>}]} {
    %c0_i32 = arith.constant 0 : i32
    %0 = arith.cmpi eq, %arg1, %c0_i32 : i32
    %1 = arith.extui %0 : i1 to i32
    %c0_i32_0 = arith.constant 0 : i32
    %2 = arith.cmpi ne, %1, %c0_i32_0 : i32
    scf.if %2 {
      %cst = arith.constant 0.000000e+00 : f32
      %13 = vector.broadcast %cst : f32 to vector<4x128xf32>
      %c0 = arith.constant 0 : index
      %c0_6 = arith.constant 0 : index
      %c0_7 = arith.constant 0 : index
      %14 = vector.load %arg4[%c0, %c0_6, %c0_7] : memref<1x4x128xf32, #tpu.memory_space<vmem>>, vector<1x4x128xf32>
      %15 = vector.shape_cast %14 : vector<1x4x128xf32> to vector<4x128xf32>
      %16 = vector.shape_cast %13 : vector<4x128xf32> to vector<1x4x128xf32>
      tpu.vector_store %arg4[%c0, %c0_6, %c0_7], %16 {strides = array<i32>} : memref<1x4x128xf32, #tpu.memory_space<vmem>>, vector<1x4x128xf32>,
    } else {
    }
    %c1_i32 = arith.constant 1 : i32
    %3 = arith.muli %arg0, %c1_i32 : i32
    %4 = arith.addi %3, %arg1 : i32
    %c16_i32 = arith.constant 16 : i32
    %5 = arith.muli %4, %c16_i32 : i32
    %c16_i32_1 = arith.constant 16 : i32
    %6 = arith.subi %c16_i32_1, %5 : i32
    %c16_i32_2 = arith.constant 16 : i32
    %7 = arith.cmpi sge, %6, %c16_i32_2 : i32
    %8 = arith.extui %7 : i1 to i32
    %c0_i32_3 = arith.constant 0 : i32
    %9 = arith.cmpi ne, %8, %c0_i32_3 : i32
    scf.if %9 {
      %c0 = arith.constant 0 : index
      %c0_6 = arith.constant 0 : index
      %13 = vector.load %arg2[%c0, %c0_6] : memref<16x128xf32, #tpu.memory_space<vmem>>, vector<16x128xf32>
      %c0_7 = arith.constant 0 : index
      %c0_8 = arith.constant 0 : index
      %14 = vector.load %arg3[%c0_7, %c0_8] : memref<16x128xf32, #tpu.memory_space<vmem>>, vector<16x128xf32>
      %15 = math.absf %13 : vector<16x128xf32>
      %cst = arith.constant 0.000000e+00 : f32
      %16 = vector.broadcast %cst : f32 to vector<16x128xf32>
      %17 = arith.subf %16, %15 : vector<16x128xf32>
      %18 = math.exp %17 : vector<16x128xf32>
      %cst_9 = arith.constant 0.000000e+00 : f32
      %19 = vector.broadcast %cst_9 : f32 to vector<16x128xf32>
      %20 = arith.maximumf %13, %19 : vector<16x128xf32>
      %21 = math.log1p %18 : vector<16x128xf32>
      %22 = arith.addf %20, %21 : vector<16x128xf32>
      %23 = arith.subf %22, %13 : vector<16x128xf32>
      %cst_10 = arith.constant 1.000000e+02 : f32
      %24 = vector.broadcast %cst_10 : f32 to vector<16x128xf32>
      %25 = arith.minimumf %22, %24 : vector<16x128xf32>
      %cst_11 = arith.constant 1.000000e+02 : f32
      %26 = vector.broadcast %cst_11 : f32 to vector<16x128xf32>
      %27 = arith.minimumf %23, %26 : vector<16x128xf32>
      %28 = arith.subf %27, %25 : vector<16x128xf32>
      %29 = arith.mulf %14, %28 : vector<16x128xf32>
      %30 = arith.addf %25, %29 : vector<16x128xf32>
      %cst_12 = arith.constant 0.000000e+00 : f32
      %31 = vector.broadcast %cst_12 : f32 to vector<16x128xf32>
      %32 = arith.subf %31, %23 : vector<16x128xf32>
      %33 = math.exp %32 : vector<16x128xf32>
      %34 = arith.mulf %33, %14 : vector<16x128xf32>
      %cst_13 = arith.constant dense<0.000000e+00> : vector<128xf32>
      %35 = vector.multi_reduction <add>, %34, %cst_13 [0] : vector<16x128xf32> to vector<128xf32>
      %36 = vector.shape_cast %35 : vector<128xf32> to vector<1x128xf32>
      %cst_14 = arith.constant dense<0.000000e+00> : vector<128xf32>
      %37 = vector.multi_reduction <add>, %33, %cst_14 [0] : vector<16x128xf32> to vector<128xf32>
      %38 = vector.shape_cast %37 : vector<128xf32> to vector<1x128xf32>
      %cst_15 = arith.constant dense<0.000000e+00> : vector<128xf32>
      %39 = vector.multi_reduction <add>, %14, %cst_15 [0] : vector<16x128xf32> to vector<128xf32>
      %40 = vector.shape_cast %39 : vector<128xf32> to vector<1x128xf32>
      %cst_16 = arith.constant dense<0.000000e+00> : vector<128xf32>
      %41 = vector.multi_reduction <add>, %30, %cst_16 [0] : vector<16x128xf32> to vector<128xf32>
      %42 = vector.shape_cast %41 : vector<128xf32> to vector<1x128xf32>
      %c0_17 = arith.constant 0 : index
      %c0_18 = arith.constant 0 : index
      %c0_19 = arith.constant 0 : index
      %43 = vector.load %arg4[%c0_17, %c0_18, %c0_19] : memref<1x4x128xf32, #tpu.memory_space<vmem>>, vector<1x4x128xf32>
      %44 = vector.shape_cast %43 : vector<1x4x128xf32> to vector<4x128xf32>
      %45 = tpu.concatenate %36, %38, %40, %42 in 0 : vector<1x128xf32>, vector<1x128xf32>, vector<1x128xf32>, vector<1x128xf32> -> vector<4x128xf32>
      %46 = arith.addf %44, %45 : vector<4x128xf32>
      %c0_20 = arith.constant 0 : index
      %c0_21 = arith.constant 0 : index
      %c0_22 = arith.constant 0 : index
      %47 = vector.load %arg4[%c0_20, %c0_21, %c0_22] : memref<1x4x128xf32, #tpu.memory_space<vmem>>, vector<1x4x128xf32>
      %48 = vector.shape_cast %47 : vector<1x4x128xf32> to vector<4x128xf32>
      %49 = vector.shape_cast %46 : vector<4x128xf32> to vector<1x4x128xf32>
      tpu.vector_store %arg4[%c0_20, %c0_21, %c0_22], %49 {strides = array<i32>} : memref<1x4x128xf32, #tpu.memory_space<vmem>>, vector<1x4x128xf32>,
    } else {
    }
    %c16_i32_4 = arith.constant 16 : i32
    %10 = arith.cmpi slt, %6, %c16_i32_4 : i32
    %11 = arith.extui %10 : i1 to i32
    %c0_i32_5 = arith.constant 0 : i32
    %12 = arith.cmpi ne, %11, %c0_i32_5 : i32
    scf.if %12 {
      %13 = tpu.iota {dimensions = array<i32: 0>} : vector<16x128xi32>
      %14 = vector.broadcast %6 : i32 to vector<16x128xi32>
      %15 = arith.cmpi slt, %13, %14 : vector<16x128xi32>
      %c0 = arith.constant 0 : index
      %c0_6 = arith.constant 0 : index
      %16 = vector.load %arg2[%c0, %c0_6] : memref<16x128xf32, #tpu.memory_space<vmem>>, vector<16x128xf32>
      %cst = arith.constant 0.000000e+00 : f32
      %17 = vector.broadcast %cst : f32 to vector<16x128xf32>
      %18 = arith.select %15, %16, %17 : vector<16x128xi1>, vector<16x128xf32>
      %c0_7 = arith.constant 0 : index
      %c0_8 = arith.constant 0 : index
      %19 = vector.load %arg3[%c0_7, %c0_8] : memref<16x128xf32, #tpu.memory_space<vmem>>, vector<16x128xf32>
      %cst_9 = arith.constant 0.000000e+00 : f32
      %20 = vector.broadcast %cst_9 : f32 to vector<16x128xf32>
      %21 = arith.select %15, %19, %20 : vector<16x128xi1>, vector<16x128xf32>
      %22 = math.absf %18 : vector<16x128xf32>
      %cst_10 = arith.constant 0.000000e+00 : f32
      %23 = vector.broadcast %cst_10 : f32 to vector<16x128xf32>
      %24 = arith.subf %23, %22 : vector<16x128xf32>
      %25 = math.exp %24 : vector<16x128xf32>
      %cst_11 = arith.constant 0.000000e+00 : f32
      %26 = vector.broadcast %cst_11 : f32 to vector<16x128xf32>
      %27 = arith.maximumf %18, %26 : vector<16x128xf32>
      %28 = math.log1p %25 : vector<16x128xf32>
      %29 = arith.addf %27, %28 : vector<16x128xf32>
      %30 = arith.subf %29, %18 : vector<16x128xf32>
      %cst_12 = arith.constant 1.000000e+02 : f32
      %31 = vector.broadcast %cst_12 : f32 to vector<16x128xf32>
      %32 = arith.minimumf %29, %31 : vector<16x128xf32>
      %cst_13 = arith.constant 1.000000e+02 : f32
      %33 = vector.broadcast %cst_13 : f32 to vector<16x128xf32>
      %34 = arith.minimumf %30, %33 : vector<16x128xf32>
      %35 = arith.subf %34, %32 : vector<16x128xf32>
      %36 = arith.mulf %21, %35 : vector<16x128xf32>
      %37 = arith.addf %32, %36 : vector<16x128xf32>
      %cst_14 = arith.constant 0.000000e+00 : f32
      %38 = vector.broadcast %cst_14 : f32 to vector<16x128xf32>
      %39 = arith.subf %38, %30 : vector<16x128xf32>
      %40 = math.exp %39 : vector<16x128xf32>
      %41 = arith.mulf %40, %21 : vector<16x128xf32>
      %cst_15 = arith.constant dense<0.000000e+00> : vector<128xf32>
      %42 = vector.multi_reduction <add>, %41, %cst_15 [0] : vector<16x128xf32> to vector<128xf32>
      %43 = vector.shape_cast %42 : vector<128xf32> to vector<1x128xf32>
      %cst_16 = arith.constant dense<0.000000e+00> : vector<128xf32>
      %44 = vector.multi_reduction <add>, %40, %cst_16 [0] : vector<16x128xf32> to vector<128xf32>
      %45 = vector.shape_cast %44 : vector<128xf32> to vector<1x128xf32>
      %cst_17 = arith.constant dense<0.000000e+00> : vector<128xf32>
      %46 = vector.multi_reduction <add>, %21, %cst_17 [0] : vector<16x128xf32> to vector<128xf32>
      %47 = vector.shape_cast %46 : vector<128xf32> to vector<1x128xf32>
      %cst_18 = arith.constant dense<0.000000e+00> : vector<128xf32>
      %48 = vector.multi_reduction <add>, %37, %cst_18 [0] : vector<16x128xf32> to vector<128xf32>
      %49 = vector.shape_cast %48 : vector<128xf32> to vector<1x128xf32>
      %c0_19 = arith.constant 0 : index
      %c0_20 = arith.constant 0 : index
      %c0_21 = arith.constant 0 : index
      %50 = vector.load %arg4[%c0_19, %c0_20, %c0_21] : memref<1x4x128xf32, #tpu.memory_space<vmem>>, vector<1x4x128xf32>
      %51 = vector.shape_cast %50 : vector<1x4x128xf32> to vector<4x128xf32>
      %52 = tpu.concatenate %43, %45, %47, %49 in 0 : vector<1x128xf32>, vector<1x128xf32>, vector<1x128xf32>, vector<1x128xf32> -> vector<4x128xf32>
      %53 = arith.addf %51, %52 : vector<4x128xf32>
      %c0_22 = arith.constant 0 : index
      %c0_23 = arith.constant 0 : index
      %c0_24 = arith.constant 0 : index
      %54 = vector.load %arg4[%c0_22, %c0_23, %c0_24] : memref<1x4x128xf32, #tpu.memory_space<vmem>>, vector<1x4x128xf32>
      %55 = vector.shape_cast %54 : vector<1x4x128xf32> to vector<4x128xf32>
      %56 = vector.shape_cast %53 : vector<4x128xf32> to vector<1x4x128xf32>
      tpu.vector_store %arg4[%c0_22, %c0_23, %c0_24], %56 {strides = array<i32>} : memref<1x4x128xf32, #tpu.memory_space<vmem>>, vector<1x4x128xf32>,
    } else {
    }
    return
  }
  func.func @transform_0(%arg0: i32, %arg1: i32) -> (i32, i32) {
    %c1_i32 = arith.constant 1 : i32
    %0 = arith.muli %arg0, %c1_i32 : i32
    %1 = arith.addi %0, %arg1 : i32
    %c0_i32 = arith.constant 0 : i32
    %c0_i32_0 = arith.constant 0 : i32
    return %1, %c0_i32 : i32, i32
  }
  func.func @transform_1(%arg0: i32, %arg1: i32) -> (i32, i32) {
    %c1_i32 = arith.constant 1 : i32
    %0 = arith.muli %arg0, %c1_i32 : i32
    %1 = arith.addi %0, %arg1 : i32
    %c0_i32 = arith.constant 0 : i32
    %c0_i32_0 = arith.constant 0 : i32
    return %1, %c0_i32 : i32, i32
  }
  func.func @transform_2(%arg0: i32, %arg1: i32) -> (i32, i32, i32) {
    %c0_i32 = arith.constant 0 : i32
    %c0_i32_0 = arith.constant 0 : i32
    %c0_i32_1 = arith.constant 0 : i32
    return %arg0, %c0_i32, %c0_i32_0 : i32, i32, i32
  }
}

</mosaic_0001>

<llo_original>
// kernel: tpu_custom_call.1
$region0: #{tpu_custom_call.1}
  #allocation0 [shape = 'u32[]', space=smem, size = 0x4, offset = 0x4, fixed_abs, tag = 'smem constant byte address 0x4 - core index']
  #allocation1 [shape = 'u32[144,128]{1,0:T(1,128)}', space=vmem, size = 0x12000, scoped, tag = 'internal scratch']
  %s0 = inlined_call_operand.hbm [shape: f32[16,128], index: 0, kind: input, shape index: {}]
  %s1 = inlined_call_operand.hbm [shape: f32[16,128], index: 1, kind: input, shape index: {}]
  %s2 = inlined_call_operand.hbm [shape: f32[1,4,128], index: 2, kind: output, shape index: {}]
  %s3 = sld [smem:[#allocation0]]
  $region38: #{tpu_custom_call.1} parent=0
    _
  %s5 = ssub.s32 1, %s3
  %s6 = scalar_select 0, %s5, %s3
  $region1: #{tpu_custom_call.1} parent=0
    #allocation2 [shape = 'u8[8192]{0}', space=vmem, size = 0x2000, scoped, tag = 'input window, operand 0, single buffered']
    #allocation3 [shape = 's32[1]{0}', space=sflag, size = 0x4, scoped, tag = 'scoped memory for tpu_custom_call.1']
    #allocation4 [shape = 's32[1]{0}', space=sflag, size = 0x4, scoped, tag = 'scoped memory for tpu_custom_call.1']
    #allocation5 [shape = 'u8[8192]{0}', space=vmem, size = 0x2000, scoped, tag = 'input window, operand 1, single buffered']
    #allocation6 [shape = 's32[1]{0}', space=sflag, size = 0x4, scoped, tag = 'scoped memory for tpu_custom_call.1']
    #allocation7 [shape = 'u8[2048]{0}', space=vmem, size = 0x800, scoped, tag = 'output window, operand 0, single buffered']
    %7 = vsyncpa [#allocation3], 0
    %8 = vsyncpa [#allocation6], 0
    %9 = vsyncpa [#allocation4], 0
    // Predicated region
    $region2: #{tpu_custom_call.1} parent=1 // pred_check
      _
    $region3: #{tpu_custom_call.1} parent=1 // pred_check_branch
      %11 = sbr.rel (0) target = $region5
    $region4: #{tpu_custom_call.1} parent=1 // pred_region
      %s12 = sadd.s32 0, 0
      %s13 = smul.u32 2, %s12
      %s15 = ssub.s32 256, 256
      %16 = vsyncadd [#allocation3], %s15
      %s17 = smul.addr %s13, 128
      %s18 = scalar_lea.hbm %s0, %s17
      %s19 = sshll.u32 [#allocation2], 4
      %s20 = int_to_ptr.vmem [resolvable:$true] %s19
      %25 = dma.hbm_to_vmem [thread:$0]  %s18, 256, %s20, [#allocation3], 128, 128, 8
    $region5: #{tpu_custom_call.1} parent=1 // pred_fallthru
      _
    // Predicated region
    $region6: #{tpu_custom_call.1} parent=1 // pred_check
      _
    $region7: #{tpu_custom_call.1} parent=1 // pred_check_branch
      %27 = sbr.rel (0) target = $region9
    $region8: #{tpu_custom_call.1} parent=1 // pred_region
      %s28 = sadd.s32 0, 0
      %s29 = smul.u32 2, %s28
      %s31 = ssub.s32 256, 256
      %32 = vsyncadd [#allocation6], %s31
      %s33 = smul.addr %s29, 128
      %s34 = scalar_lea.hbm %s1, %s33
      %s35 = sshll.u32 [#allocation5], 4
      %s36 = int_to_ptr.vmem [resolvable:$true] %s35
      %41 = dma.hbm_to_vmem [thread:$0]  %s34, 256, %s36, [#allocation6], 128, 128, 8
    $region9: #{tpu_custom_call.1} parent=1 // pred_fallthru
      _
    // Predicated region
    $region10: #{tpu_custom_call.1} parent=1 // pred_check
      _
    $region11: #{tpu_custom_call.1} parent=1 // pred_check_branch
      %43 = sbr.rel (0) target = $region13
    $region12: #{tpu_custom_call.1} parent=1 // pred_region
      %44 = dma.done [#allocation3], 256
    $region13: #{tpu_custom_call.1} parent=1 // pred_fallthru
      _
    // Predicated region
    $region14: #{tpu_custom_call.1} parent=1 // pred_check
      _
    $region15: #{tpu_custom_call.1} parent=1 // pred_check_branch
      %46 = sbr.rel (0) target = $region17
    $region16: #{tpu_custom_call.1} parent=1 // pred_region
      %47 = dma.done [#allocation6], 256
    $region17: #{tpu_custom_call.1} parent=1 // pred_fallthru
      _
    %s48 = sadd.s32 0, 0
    %s49 = smul.u32 2, %s48
    %s50 = sadd.s32 0, 0
    %s51 = smul.u32 2, %s50
    %p52 = scmp.eq.s32.totalorder 0, 0
    // Predicated region
    $region18: #{tpu_custom_call.1} parent=1 // pred_check
      %p53 = pneg %p52
    $region19: #{tpu_custom_call.1} parent=1 // pred_check_branch
      %55 = sbr.rel (%p53) target = $region21
    $region20: #{tpu_custom_call.1} parent=1 // pred_region
      %56 = vst [vmem:[#allocation7] sm:$0xf] 0.0
    $region21: #{tpu_custom_call.1} parent=1 // pred_fallthru
      _
    %s57 = sadd.s32 0, 0
    %s58 = smul.u32 %s57, 16
    %s59 = ssub.s32 16, %s58
    %p60 = scmp.ge.s32.totalorder %s59, 16
    // Predicated region
    $region22: #{tpu_custom_call.1} parent=1 // pred_check
      %p61 = pneg %p60
    $region23: #{tpu_custom_call.1} parent=1 // pred_check_branch
      %63 = sbr.rel (%p61) target = $region25
    $region24: #{tpu_custom_call.1} parent=1 // pred_region
      %v64 = vld [vmem:[#allocation2] sm:$0xff]
      %v65 = vld [vmem:[#allocation2 + $0x8] sm:$0xff]
      %v66 = vld [vmem:[#allocation5] sm:$0xff]
      %v67 = vld [vmem:[#allocation5 + $0x8] sm:$0xff]
      %v68 = vand.u32 2147483647, %v64
      %v69 = vand.u32 2147483647, %v65
      %v70 = vsub.f32 0.0, %v68
      %v71 = vsub.f32 0.0, %v69
      %v72 = vmul.f32 %v70, 1.442695
      %v73 = vpow.pop %v72
      %v74 = vmul.f32 %v71, 1.442695
      %v75 = vpow.pop %v74
      %v76 = vmax.f32 %v64, 0.0
      %v77 = vmax.f32 %v65, 0.0
      %v78 = vadd.f32 %v73, 1.0
      %v79 = vlog2.pop %v78
      %v80 = vmul.f32 %v79, 0.6931472
      %v81 = vmul.f32 -0.5, %v73
      %v82 = vadd.f32 %v81, 1.0
      %v83 = vmul.f32 %v82, %v73
      %v84 = vand.u32 2147483647, %v73
      %vm85 = vcmp.lt.f32.partialorder %v84, 0.0004427343
      %v86 = vsel %vm85, %v83, %v80
      %v87 = vadd.f32 %v75, 1.0
      %v88 = vlog2.pop %v87
      %v89 = vmul.f32 %v88, 0.6931472
      %v90 = vmul.f32 -0.5, %v75
      %v91 = vadd.f32 %v90, 1.0
      %v92 = vmul.f32 %v91, %v75
      %v93 = vand.u32 2147483647, %v75
      %vm94 = vcmp.lt.f32.partialorder %v93, 0.0004427343
      %v95 = vsel %vm94, %v92, %v89
      %v96 = vadd.f32 %v76, %v86
      %v97 = vadd.f32 %v77, %v95
      %v98 = vsub.f32 %v96, %v64
      %v99 = vsub.f32 %v97, %v65
      %v100 = vmin.f32 %v96, 100.0
      %v101 = vmin.f32 %v97, 100.0
      %v102 = vmin.f32 %v98, 100.0
      %v103 = vmin.f32 %v99, 100.0
      %v104 = vsub.f32 %v102, %v100
      %v105 = vsub.f32 %v103, %v101
      %v106 = vmul.f32 %v66, %v104
      %v107 = vmul.f32 %v67, %v105
      %v108 = vadd.f32 %v100, %v106
      %v109 = vadd.f32 %v101, %v107
      %v110 = vsub.f32 0.0, %v98
      %v111 = vsub.f32 0.0, %v99
      %v112 = vmul.f32 %v110, 1.442695
      %v113 = vpow.pop %v112
      %v114 = vmul.f32 %v111, 1.442695
      %v115 = vpow.pop %v114
      %v116 = vmul.f32 %v113, %v66
      %v117 = vmul.f32 %v115, %v67
      %v118 = vadd.f32 %v116, %v117
      %v119 = vrot.slane %v118, 4
      %v120 = vadd.f32 %v118, %v119
      %v121 = vrot.slane %v120, 2
      %v122 = vadd.f32 %v120, %v121
      %v123 = vrot.slane %v122, 1
      %v124 = vadd.f32 %v122, %v123
      %v125 = vadd.f32 %v113, %v115
      %v126 = vrot.slane %v125, 4
      %v127 = vadd.f32 %v125, %v126
      %v128 = vrot.slane %v127, 2
      %v129 = vadd.f32 %v127, %v128
      %v130 = vrot.slane %v129, 1
      %v131 = vadd.f32 %v129, %v130
      %v132 = vadd.f32 %v66, %v67
      %v133 = vrot.slane %v132, 4
      %v134 = vadd.f32 %v132, %v133
      %v135 = vrot.slane %v134, 2
      %v136 = vadd.f32 %v134, %v135
      %v137 = vrot.slane %v136, 1
      %v138 = vadd.f32 %v136, %v137
      %v139 = vadd.f32 %v108, %v109
      %v140 = vrot.slane %v139, 4
      %v141 = vadd.f32 %v139, %v140
      %v142 = vrot.slane %v141, 2
      %v143 = vadd.f32 %v141, %v142
      %v144 = vrot.slane %v143, 1
      %v145 = vadd.f32 %v143, %v144
      %v146 = vld [vmem:[#allocation7] sm:$0xf]
      %vm147 = vcmask 1040384
      %v148 = vsel %vm147, %v124, %v131
      %vm149 = vcmask 1041408
      %v150 = vsel %vm149, %v148, %v138
      %vm151 = vcmask 1042432
      %v152 = vsel %vm151, %v150, %v145
      %v153 = vadd.f32 %v146, %v152
      %154 = vst [vmem:[#allocation7] sm:$0xf] %v153
    $region25: #{tpu_custom_call.1} parent=1 // pred_fallthru
      _
    %p155 = scmp.lt.s32.totalorder %s59, 16
    // Predicated region
    $region26: #{tpu_custom_call.1} parent=1 // pred_check
      %p156 = pneg %p155
    $region27: #{tpu_custom_call.1} parent=1 // pred_check_branch
      %158 = sbr.rel (%p156) target = $region29
    $region28: #{tpu_custom_call.1} parent=1 // pred_region
      %v159 = vlaneseq
      %v160 = vshrl.u32 %v159, 7
      %v161 = vadd.s32 %v160, 8
      %v162 = vstv %s59
      %vm163 = vcmp.lt.s32.totalorder %v160, %v162
      %vm164 = vcmp.lt.s32.totalorder %v161, %v162
      %v165 = vld [vmem:[#allocation2] sm:$0xff]
      %v166 = vld [vmem:[#allocation2 + $0x8] sm:$0xff]
      %v167 = vsel %vm163, %v165, 0.0
      %v168 = vsel %vm164, %v166, 0.0
      %v169 = vld [vmem:[#allocation5] sm:$0xff]
      %v170 = vld [vmem:[#allocation5 + $0x8] sm:$0xff]
      %v171 = vsel %vm163, %v169, 0.0
      %v172 = vsel %vm164, %v170, 0.0
      %v173 = vand.u32 2147483647, %v167
      %v174 = vand.u32 2147483647, %v168
      %v175 = vsub.f32 0.0, %v173
      %v176 = vsub.f32 0.0, %v174
      %v177 = vmul.f32 %v175, 1.442695
      %v178 = vpow.pop %v177
      %v179 = vmul.f32 %v176, 1.442695
      %v180 = vpow.pop %v179
      %v181 = vmax.f32 %v167, 0.0
      %v182 = vmax.f32 %v168, 0.0
      %v183 = vadd.f32 %v178, 1.0
      %v184 = vlog2.pop %v183
      %v185 = vmul.f32 %v184, 0.6931472
      %v186 = vmul.f32 -0.5, %v178
      %v187 = vadd.f32 %v186, 1.0
      %v188 = vmul.f32 %v187, %v178
      %v189 = vand.u32 2147483647, %v178
      %vm190 = vcmp.lt.f32.partialorder %v189, 0.0004427343
      %v191 = vsel %vm190, %v188, %v185
      %v192 = vadd.f32 %v180, 1.0
      %v193 = vlog2.pop %v192
      %v194 = vmul.f32 %v193, 0.6931472
      %v195 = vmul.f32 -0.5, %v180
      %v196 = vadd.f32 %v195, 1.0
      %v197 = vmul.f32 %v196, %v180
      %v198 = vand.u32 2147483647, %v180
      %vm199 = vcmp.lt.f32.partialorder %v198, 0.0004427343
      %v200 = vsel %vm199, %v197, %v194
      %v201 = vadd.f32 %v181, %v191
      %v202 = vadd.f32 %v182, %v200
      %v203 = vsub.f32 %v201, %v167
      %v204 = vsub.f32 %v202, %v168
      %v205 = vmin.f32 %v201, 100.0
      %v206 = vmin.f32 %v202, 100.0
      %v207 = vmin.f32 %v203, 100.0
      %v208 = vmin.f32 %v204, 100.0
      %v209 = vsub.f32 %v207, %v205
      %v210 = vsub.f32 %v208, %v206
      %v211 = vmul.f32 %v171, %v209
      %v212 = vmul.f32 %v172, %v210
      %v213 = vadd.f32 %v205, %v211
      %v214 = vadd.f32 %v206, %v212
      %v215 = vsub.f32 0.0, %v203
      %v216 = vsub.f32 0.0, %v204
      %v217 = vmul.f32 %v215, 1.442695
      %v218 = vpow.pop %v217
      %v219 = vmul.f32 %v216, 1.442695
      %v220 = vpow.pop %v219
      %v221 = vmul.f32 %v218, %v171
      %v222 = vmul.f32 %v220, %v172
      %v223 = vadd.f32 %v221, %v222
      %v224 = vrot.slane %v223, 4
      %v225 = vadd.f32 %v223, %v224
      %v226 = vrot.slane %v225, 2
      %v227 = vadd.f32 %v225, %v226
      %v228 = vrot.slane %v227, 1
      %v229 = vadd.f32 %v227, %v228
      %v230 = vadd.f32 %v218, %v220
      %v231 = vrot.slane %v230, 4
      %v232 = vadd.f32 %v230, %v231
      %v233 = vrot.slane %v232, 2
      %v234 = vadd.f32 %v232, %v233
      %v235 = vrot.slane %v234, 1
      %v236 = vadd.f32 %v234, %v235
      %v237 = vadd.f32 %v171, %v172
      %v238 = vrot.slane %v237, 4
      %v239 = vadd.f32 %v237, %v238
      %v240 = vrot.slane %v239, 2
      %v241 = vadd.f32 %v239, %v240
      %v242 = vrot.slane %v241, 1
      %v243 = vadd.f32 %v241, %v242
      %v244 = vadd.f32 %v213, %v214
      %v245 = vrot.slane %v244, 4
      %v246 = vadd.f32 %v244, %v245
      %v247 = vrot.slane %v246, 2
      %v248 = vadd.f32 %v246, %v247
      %v249 = vrot.slane %v248, 1
      %v250 = vadd.f32 %v248, %v249
      %v251 = vld [vmem:[#allocation7] sm:$0xf]
      %vm252 = vcmask 1040384
      %v253 = vsel %vm252, %v229, %v236
      %vm254 = vcmask 1041408
      %v255 = vsel %vm254, %v253, %v243
      %vm256 = vcmask 1042432
      %v257 = vsel %vm256, %v255, %v250
      %v258 = vadd.f32 %v251, %v257
      %259 = vst [vmem:[#allocation7] sm:$0xf] %v258
    $region29: #{tpu_custom_call.1} parent=1 // pred_fallthru
      _
    // Predicated region
    $region30: #{tpu_custom_call.1} parent=1 // pred_check
      _
    $region31: #{tpu_custom_call.1} parent=1 // pred_check_branch
      %261 = sbr.rel (0) target = $region33
    $region32: #{tpu_custom_call.1} parent=1 // pred_region
      %s263 = ssub.s32 64, 64
      %264 = vsyncadd [#allocation4], %s263
      %s266 = sshll.u32 [#allocation7], 4
      %s267 = int_to_ptr.vmem [resolvable:$true] %s266
      %269 = dma.vmem_to_hbm [thread:$0]  %s267, 64, %s2, [#allocation4]
    $region33: #{tpu_custom_call.1} parent=1 // pred_fallthru
      _
    // Predicated region
    $region34: #{tpu_custom_call.1} parent=1 // pred_check
      _
    $region35: #{tpu_custom_call.1} parent=1 // pred_check_branch
      %271 = sbr.rel (0) target = $region37
    $region36: #{tpu_custom_call.1} parent=1 // pred_region
      %272 = dma.done [#allocation4], 64
    $region37: #{tpu_custom_call.1} parent=1 // pred_fallthru
      _
    %273 = vsyncpa [#allocation3], 1
    %274 = vsyncpa [#allocation6], 1
    %275 = vsyncpa [#allocation4], 1

</llo_original>
